<compile_context>
chip_gen: v7x
topology: tpu7x:2x2x1
jax: 0.10.0
libtpu: 0.0.40
codegen_flags: <defaults>
</compile_context>

<pallas_src>
import functools

import numpy as np
import jax
import jax.numpy as jnp
from jax import lax
from jax.experimental import pallas as pl
from jax.experimental.pallas import tpu as pltpu

CONF_THRESH = 0.01
IOU_THRESH = 0.5
EPS = 1e-9

B_BLK = 8               # default batch rows per grid step (sublane axis)
LANES = 128             # detection lane padding
STREAM_N_THRESHOLD = 512  # above this many lanes, stream fields from VMEM in the loop


def _od2score_kernel(tgt_ref, pred_ref, out_ref, tconf_ref, *,
                     conf_thresh, iou_thresh, eps, stream_fields):
    """b_blk batch rows per call: conf filter -> greedy class-aware NMS -> max IoU(target)*conf."""
    # pred_ref block: (6, b_blk, n_pad) == fields x (batch sublanes) x (detection lanes)
    conf0 = pred_ref[4]
    b_blk, n_pad = conf0.shape
    neg_inf = jnp.float32(-jnp.inf)

    # target bbox: 4 scalars straight out of SMEM
    tx1 = tgt_ref[0]
    ty1 = tgt_ref[1]
    tx2 = tgt_ref[2]
    ty2 = tgt_ref[3]
    tarea = (tx2 - tx1) * (ty2 - ty1)

    # Class-offset trick: span > any possible x extent in this block, so boxes shifted
    # by cls*span can only intersect when they share a class.  Computed once (scalar).
    span = jnp.max(jnp.maximum(jnp.abs(pred_ref[0]), jnp.abs(pred_ref[2]))) * 2.0 + 1.0

    def geometry():
        x1 = pred_ref[0]
        y1 = pred_ref[1]
        x2 = pred_ref[2]
        y2 = pred_ref[3]
        off = pred_ref[5] * span                      # cls * span  (x axis only)
        area = (x2 - x1) * (y2 - y1)                  # offset cancels: area unchanged
        idx = lax.broadcasted_iota(jnp.int32, (b_blk, n_pad), 1)
        return x1 + off, y1, x2 + off, y2, area, idx

    def target_conf():
        # IoU of every detection with the target bbox, times its confidence (un-offset coords).
        x1 = pred_ref[0]
        y1 = pred_ref[1]
        x2 = pred_ref[2]
        y2 = pred_ref[3]
        area = (x2 - x1) * (y2 - y1)
        ix1 = jnp.maximum(x1, tx1)
        iy1 = jnp.maximum(y1, ty1)
        ix2 = jnp.minimum(x2, tx2)
        iy2 = jnp.minimum(y2, ty2)
        inter = jnp.maximum(ix2 - ix1, 0.0) * jnp.maximum(iy2 - iy1, 0.0)
        return inter / (area + tarea - inter + eps) * pred_ref[4]

    if stream_fields:
        # Large Np: keep wide arrays out of the vreg file across iterations; the loop
        # body re-reads the fields from the VMEM block (cheaper than spill store+load).
        # tconf needs a divide, so it is materialized once into VMEM scratch.
        tconf_ref[...] = target_conf()
        hoisted = None
    else:
        hoisted = geometry() + (target_conf(),)

    # conf filter: inactive / padded lanes carry -inf and can never win the argmax.
    masked0 = jnp.where(conf0 > conf_thresh, conf0, neg_inf)
    best0 = jnp.max(masked0, axis=-1, keepdims=True)    # (b_blk, 1) per-row running max
    score0 = jnp.zeros((b_blk, 1), jnp.float32)

    def cond(carry):
        _, _, best = carry
        return jnp.max(best) > neg_inf                  # any row still has an active box

    def body(carry):
        masked, score, best = carry
        if hoisted is not None:
            x1n, y1, x2n, y2, area, idx, tconf = hoisted
        else:
            x1n, y1, x2n, y2, area, idx = geometry()
            tconf = tconf_ref[...]

        row_active = best > neg_inf                     # (b_blk, 1); dead rows stay untouched

        # exact argmax with lowest-index tie-break (matches the stable-sort order of the
        # reference; equality on carried f32 values is exact).
        cand = (masked == best) & row_active
        best_idx = jnp.min(jnp.where(cand, idx, n_pad), axis=-1, keepdims=True)
        is_best = idx == best_idx                       # all-False for dead rows (best_idx == n_pad)

        def gather(v):                                  # (b_blk, 1) field of the selected box
            return jnp.sum(jnp.where(is_best, v, 0.0), axis=-1, keepdims=True)

        bx1, by1, bx2, by2 = gather(x1n), gather(y1), gather(x2n), gather(y2)
        barea = (bx2 - bx1) * (by2 - by1)

        ix1 = jnp.maximum(x1n, bx1)
        iy1 = jnp.maximum(y1, by1)
        ix2 = jnp.minimum(x2n, bx2)
        iy2 = jnp.minimum(y2, by2)
        inter = jnp.maximum(ix2 - ix1, 0.0) * jnp.maximum(iy2 - iy1, 0.0)
        # divide-free suppression; class-awareness is already baked into the x offsets
        # (cross-class pairs have inter == 0 exactly).
        suppress = inter > iou_thresh * (area + barea - inter + eps)

        new_score = jnp.maximum(score, gather(tconf))   # selected boxes == kept boxes
        new_masked = jnp.where(suppress | is_best, neg_inf, masked)
        new_best = jnp.max(new_masked, axis=-1, keepdims=True)
        return new_masked, new_score, new_best

    _, score, _ = lax.while_loop(cond, body, (masked0, score0, best0))
    out_ref[...] = score


def od2score(prediction, target_bbox, conf_thresh=CONF_THRESH, iou_thresh=IOU_THRESH, *,
             b_blk=B_BLK, max_detections=None):
    """prediction: (B, N, 6) with (x1,y1,x2,y2,conf,cls) -> scores (B,)."""
    pred = jnp.asarray(prediction, jnp.float32)
    B, N, C = pred.shape
    assert C == 6
    assert b_blk % 8 == 0, "batch block must be a multiple of 8 sublanes"

    if max_detections is not None and int(max_detections) < N:
        # Optional wrapper-side pre-filter: keep only the top-k detections by confidence.
        # Bit-identical to the full run as long as k covers every conf > conf_thresh box.
        k = int(max_detections)
        _, top_idx = lax.top_k(pred[:, :, 4], k)
        pred = jnp.take_along_axis(pred, top_idx[:, :, None], axis=1)
        N = k

    n_pad = ((N + LANES - 1) // LANES) * LANES            # lane-dense detection axis
    b_pad = ((B + b_blk - 1) // b_blk) * b_blk            # full sublane batch blocks

    # zero padding => conf = 0 <= conf_thresh, so padded rows/lanes are never active.
    pred = jnp.pad(pred, ((0, b_pad - B), (0, n_pad - N), (0, 0)))
    pred_t = jnp.transpose(pred, (2, 0, 1))               # (6, b_pad, n_pad)
    tgt = jnp.asarray(target_bbox, jnp.float32).reshape(4)

    stream_fields = n_pad >= STREAM_N_THRESHOLD

    kernel = functools.partial(
        _od2score_kernel,
        conf_thresh=float(conf_thresh),
        iou_thresh=float(iou_thresh),
        eps=float(EPS),
        stream_fields=stream_fields,
    )

    # pred block (double-buffered by the pipeline) + tconf scratch; clamp to chip VMEM.
    block_bytes = 6 * b_blk * n_pad * 4 + b_blk * n_pad * 4
    try:
        vmem_cap = int(pltpu.get_tpu_info().vmem_capacity_bytes)
    except Exception:                                      # pragma: no cover
        vmem_cap = 64 << 20                                # conservative (v7x per-TC)
    need = 3 * block_bytes + (4 << 20)
    vmem_limit = int(min(max(32 << 20, need), max(need, vmem_cap - (16 << 20))))

    out = pl.pallas_call(
        kernel,
        out_shape=jax.ShapeDtypeStruct((b_pad, 1), jnp.float32),
        grid=(b_pad // b_blk,),
        in_specs=[
            pl.BlockSpec(memory_space=pltpu.MemorySpace.SMEM),     # target bbox: 4 scalars in SMEM
            pl.BlockSpec((6, b_blk, n_pad), lambda i: (0, i, 0)),  # b_blk batch rows per step
        ],
        out_specs=pl.BlockSpec((b_blk, 1), lambda i: (i, 0)),
        scratch_shapes=[pltpu.VMEM((b_blk, n_pad), jnp.float32)],  # tconf (streaming mode)
        compiler_params=pltpu.CompilerParams(
            dimension_semantics=("parallel",),
            vmem_limit_bytes=vmem_limit,
        ),
    )(tgt, pred_t)
    return out[:B, 0]


# ----------------------- pure-numpy reference ------------------------------
def _iou_one_vs_many(box, boxes, eps=EPS):
    ix1 = np.maximum(boxes[:, 0], box[0])
    iy1 = np.maximum(boxes[:, 1], box[1])
    ix2 = np.minimum(boxes[:, 2], box[2])
    iy2 = np.minimum(boxes[:, 3], box[3])
    inter = np.maximum(ix2 - ix1, 0.0) * np.maximum(iy2 - iy1, 0.0)
    barea = (box[2] - box[0]) * (box[3] - box[1])
    areas = (boxes[:, 2] - boxes[:, 0]) * (boxes[:, 3] - boxes[:, 1])
    return inter / (areas + barea - inter + eps)


def _ref_scores(pred, target, conf_thresh, iou_thresh):
    B, N, _ = pred.shape
    out = np.zeros(B, np.float32)
    for b in range(B):
        boxes, conf, cls = pred[b, :, :4], pred[b, :, 4], pred[b, :, 5]
        active = conf > conf_thresh
        keep = []
        for i in np.argsort(-conf, kind="stable"):
            if not active[i]:
                continue
            keep.append(i)
            active[i] = False
            iou = _iou_one_vs_many(boxes[i], boxes)
            active &= ~((iou > iou_thresh) & (cls == cls[i]))
        if keep:
            kb = boxes[np.array(keep)]
            kc = conf[np.array(keep)]
            out[b] = float(np.max(_iou_one_vs_many(target[0], kb) * kc))
    return out


if __name__ == "__main__":
    key = jax.random.PRNGKey(0)

    def make_inputs(k, B, N, field=12.0, n_cls=3):
        k1, k2, k3, k4 = jax.random.split(k, 4)
        tl = jax.random.uniform(k1, (B, N, 2), minval=0.0, maxval=field)
        wh = jax.random.uniform(k2, (B, N, 2), minval=1.0, maxval=6.0)
        boxes = jnp.concatenate([tl, tl + wh], axis=-1)                  # x1,y1,x2,y2
        conf = jax.random.uniform(k3, (B, N, 1), minval=0.0, maxval=1.0)
        cls = jax.random.randint(k4, (B, N, 1), 0, n_cls).astype(jnp.float32)
        return jnp.concatenate([boxes, conf, cls], axis=-1)              # (B, N, 6)

    target_bbox = np.array([[2.0, 2.0, 10.0, 10.0]], dtype=np.float32)   # (1, 4)
    k_a, k_b, k_c = jax.random.split(key, 3)

    # Small case: pads N 8 -> 128 lanes and B 2 -> 8 sublane rows (single grid step, hoisted path).
    pred_a = make_inputs(k_a, B=2, N=8)
    scores_a = jax.block_until_ready(od2score(pred_a, target_bbox))
    ref_a = _ref_scores(np.asarray(pred_a, np.float32), target_bbox, CONF_THRESH, IOU_THRESH)
    np.testing.assert_allclose(np.asarray(scores_a), ref_a, rtol=1e-4, atol=1e-5)

    # Medium case: pads N 200 -> 256 lanes, B 9 -> 16 rows (grid of 2 steps, hoisted path).
    pred_b = make_inputs(k_b, B=9, N=200, field=30.0)
    scores_b = jax.block_until_ready(od2score(pred_b, target_bbox))
    ref_b = _ref_scores(np.asarray(pred_b, np.float32), target_bbox, CONF_THRESH, IOU_THRESH)
    np.testing.assert_allclose(np.asarray(scores_b), ref_b, rtol=1e-4, atol=1e-5)

    # Large case: pads N 520 -> 640 lanes (>= 512), exercising the VMEM-streaming loop body.
    pred_c = make_inputs(k_c, B=4, N=520, field=48.0)
    scores_c = jax.block_until_ready(od2score(pred_c, target_bbox))
    ref_c = _ref_scores(np.asarray(pred_c, np.float32), target_bbox, CONF_THRESH, IOU_THRESH)
    np.testing.assert_allclose(np.asarray(scores_c), ref_c, rtol=1e-4, atol=1e-5)

    print("KERNEL_OK")
</pallas_src>

<mosaic_0001>
module attributes {stable_mosaic.version = 11 : i64} {
  func.func @_od2score_kernel(%arg0: i32, %arg1: memref<4xf32, #tpu.memory_space<smem>>, %arg2: memref<6x8x128xf32, #tpu.memory_space<vmem>>, %arg3: memref<8x1xf32, #tpu.memory_space<vmem>>, %arg4: memref<8x128xf32, #tpu.memory_space<vmem>>) attributes {dimension_semantics = [#tpu.dimension_semantics<parallel>], iteration_bounds = array<i64: 1>, scalar_prefetch = 0 : i64, scratch_operands = 1 : i64, tpu.core_type = #tpu.core_type<tc>, window_params = [{transform_indices = @transform_0, window_bounds = array<i64: 4>}, {transform_indices = @transform_1, window_bounds = array<i64: 6, 8, 128>}, {transform_indices = @transform_2, window_bounds = array<i64: 8, 1>}]} {
    %c4 = arith.constant 4 : index
    %c0 = arith.constant 0 : index
    %c0_0 = arith.constant 0 : index
    %0 = vector.load %arg2[%c4, %c0, %c0_0] : memref<6x8x128xf32, #tpu.memory_space<vmem>>, vector<1x8x128xf32>
    %1 = vector.shape_cast %0 : vector<1x8x128xf32> to vector<8x128xf32>
    %c0_1 = arith.constant 0 : index
    %2 = memref.load %arg1[%c0_1] : memref<4xf32, #tpu.memory_space<smem>>
    %c1 = arith.constant 1 : index
    %3 = memref.load %arg1[%c1] : memref<4xf32, #tpu.memory_space<smem>>
    %c2 = arith.constant 2 : index
    %4 = memref.load %arg1[%c2] : memref<4xf32, #tpu.memory_space<smem>>
    %c3 = arith.constant 3 : index
    %5 = memref.load %arg1[%c3] : memref<4xf32, #tpu.memory_space<smem>>
    %6 = arith.subf %4, %2 : f32
    %7 = arith.subf %5, %3 : f32
    %8 = arith.mulf %6, %7 : f32
    %c0_2 = arith.constant 0 : index
    %c0_3 = arith.constant 0 : index
    %c0_4 = arith.constant 0 : index
    %9 = vector.load %arg2[%c0_2, %c0_3, %c0_4] : memref<6x8x128xf32, #tpu.memory_space<vmem>>, vector<1x8x128xf32>
    %10 = vector.shape_cast %9 : vector<1x8x128xf32> to vector<8x128xf32>
    %11 = math.absf %10 : vector<8x128xf32>
    %c2_5 = arith.constant 2 : index
    %c0_6 = arith.constant 0 : index
    %c0_7 = arith.constant 0 : index
    %12 = vector.load %arg2[%c2_5, %c0_6, %c0_7] : memref<6x8x128xf32, #tpu.memory_space<vmem>>, vector<1x8x128xf32>
    %13 = vector.shape_cast %12 : vector<1x8x128xf32> to vector<8x128xf32>
    %14 = math.absf %13 : vector<8x128xf32>
    %15 = arith.maximumf %11, %14 : vector<8x128xf32>
    %16 = vector.shape_cast %15 : vector<8x128xf32> to vector<1x8x128xf32>
    %cst = arith.constant dense<0xFF800000> : vector<1xf32>
    %17 = vector.multi_reduction <maximumf>, %16, %cst [1, 2] : vector<1x8x128xf32> to vector<1xf32>
    %18 = vector.shape_cast %17 : vector<1xf32> to vector<1x1x1xf32>
    %19 = vector.extract %18[0, 0, 0] : f32 from vector<1x1x1xf32>
    %cst_8 = arith.constant 2.000000e+00 : f32
    %20 = arith.mulf %19, %cst_8 : f32
    %cst_9 = arith.constant 1.000000e+00 : f32
    %21 = arith.addf %20, %cst_9 : f32
    %c0_10 = arith.constant 0 : index
    %c0_11 = arith.constant 0 : index
    %c0_12 = arith.constant 0 : index
    %22 = vector.load %arg2[%c0_10, %c0_11, %c0_12] : memref<6x8x128xf32, #tpu.memory_space<vmem>>, vector<1x8x128xf32>
    %23 = vector.shape_cast %22 : vector<1x8x128xf32> to vector<8x128xf32>
    %c1_13 = arith.constant 1 : index
    %c0_14 = arith.constant 0 : index
    %c0_15 = arith.constant 0 : index
    %24 = vector.load %arg2[%c1_13, %c0_14, %c0_15] : memref<6x8x128xf32, #tpu.memory_space<vmem>>, vector<1x8x128xf32>
    %25 = vector.shape_cast %24 : vector<1x8x128xf32> to vector<8x128xf32>
    %c2_16 = arith.constant 2 : index
    %c0_17 = arith.constant 0 : index
    %c0_18 = arith.constant 0 : index
    %26 = vector.load %arg2[%c2_16, %c0_17, %c0_18] : memref<6x8x128xf32, #tpu.memory_space<vmem>>, vector<1x8x128xf32>
    %27 = vector.shape_cast %26 : vector<1x8x128xf32> to vector<8x128xf32>
    %c3_19 = arith.constant 3 : index
    %c0_20 = arith.constant 0 : index
    %c0_21 = arith.constant 0 : index
    %28 = vector.load %arg2[%c3_19, %c0_20, %c0_21] : memref<6x8x128xf32, #tpu.memory_space<vmem>>, vector<1x8x128xf32>
    %29 = vector.shape_cast %28 : vector<1x8x128xf32> to vector<8x128xf32>
    %c5 = arith.constant 5 : index
    %c0_22 = arith.constant 0 : index
    %c0_23 = arith.constant 0 : index
    %30 = vector.load %arg2[%c5, %c0_22, %c0_23] : memref<6x8x128xf32, #tpu.memory_space<vmem>>, vector<1x8x128xf32>
    %31 = vector.shape_cast %30 : vector<1x8x128xf32> to vector<8x128xf32>
    %32 = vector.broadcast %21 : f32 to vector<8x128xf32>
    %33 = arith.mulf %31, %32 : vector<8x128xf32>
    %34 = arith.subf %27, %23 : vector<8x128xf32>
    %35 = arith.subf %29, %25 : vector<8x128xf32>
    %36 = arith.mulf %34, %35 : vector<8x128xf32>
    %37 = tpu.iota {dimensions = array<i32: 1>} : vector<8x128xi32>
    %38 = arith.addf %23, %33 : vector<8x128xf32>
    %39 = arith.addf %27, %33 : vector<8x128xf32>
    %c0_24 = arith.constant 0 : index
    %c0_25 = arith.constant 0 : index
    %c0_26 = arith.constant 0 : index
    %40 = vector.load %arg2[%c0_24, %c0_25, %c0_26] : memref<6x8x128xf32, #tpu.memory_space<vmem>>, vector<1x8x128xf32>
    %41 = vector.shape_cast %40 : vector<1x8x128xf32> to vector<8x128xf32>
    %c1_27 = arith.constant 1 : index
    %c0_28 = arith.constant 0 : index
    %c0_29 = arith.constant 0 : index
    %42 = vector.load %arg2[%c1_27, %c0_28, %c0_29] : memref<6x8x128xf32, #tpu.memory_space<vmem>>, vector<1x8x128xf32>
    %43 = vector.shape_cast %42 : vector<1x8x128xf32> to vector<8x128xf32>
    %c2_30 = arith.constant 2 : index
    %c0_31 = arith.constant 0 : index
    %c0_32 = arith.constant 0 : index
    %44 = vector.load %arg2[%c2_30, %c0_31, %c0_32] : memref<6x8x128xf32, #tpu.memory_space<vmem>>, vector<1x8x128xf32>
    %45 = vector.shape_cast %44 : vector<1x8x128xf32> to vector<8x128xf32>
    %c3_33 = arith.constant 3 : index
    %c0_34 = arith.constant 0 : index
    %c0_35 = arith.constant 0 : index
    %46 = vector.load %arg2[%c3_33, %c0_34, %c0_35] : memref<6x8x128xf32, #tpu.memory_space<vmem>>, vector<1x8x128xf32>
    %47 = vector.shape_cast %46 : vector<1x8x128xf32> to vector<8x128xf32>
    %48 = arith.subf %45, %41 : vector<8x128xf32>
    %49 = arith.subf %47, %43 : vector<8x128xf32>
    %50 = arith.mulf %48, %49 : vector<8x128xf32>
    %51 = vector.broadcast %2 : f32 to vector<8x128xf32>
    %52 = arith.maximumf %41, %51 : vector<8x128xf32>
    %53 = vector.broadcast %3 : f32 to vector<8x128xf32>
    %54 = arith.maximumf %43, %53 : vector<8x128xf32>
    %55 = vector.broadcast %4 : f32 to vector<8x128xf32>
    %56 = arith.minimumf %45, %55 : vector<8x128xf32>
    %57 = vector.broadcast %5 : f32 to vector<8x128xf32>
    %58 = arith.minimumf %47, %57 : vector<8x128xf32>
    %59 = arith.subf %56, %52 : vector<8x128xf32>
    %cst_36 = arith.constant 0.000000e+00 : f32
    %60 = vector.broadcast %cst_36 : f32 to vector<8x128xf32>
    %61 = arith.maximumf %59, %60 : vector<8x128xf32>
    %62 = arith.subf %58, %54 : vector<8x128xf32>
    %cst_37 = arith.constant 0.000000e+00 : f32
    %63 = vector.broadcast %cst_37 : f32 to vector<8x128xf32>
    %64 = arith.maximumf %62, %63 : vector<8x128xf32>
    %65 = arith.mulf %61, %64 : vector<8x128xf32>
    %66 = vector.broadcast %8 : f32 to vector<8x128xf32>
    %67 = arith.addf %50, %66 : vector<8x128xf32>
    %68 = arith.subf %67, %65 : vector<8x128xf32>
    %cst_38 = arith.constant 9.99999971E-10 : f32
    %69 = vector.broadcast %cst_38 : f32 to vector<8x128xf32>
    %70 = arith.addf %68, %69 : vector<8x128xf32>
    %71 = arith.divf %65, %70 : vector<8x128xf32>
    %c4_39 = arith.constant 4 : index
    %c0_40 = arith.constant 0 : index
    %c0_41 = arith.constant 0 : index
    %72 = vector.load %arg2[%c4_39, %c0_40, %c0_41] : memref<6x8x128xf32, #tpu.memory_space<vmem>>, vector<1x8x128xf32>
    %73 = vector.shape_cast %72 : vector<1x8x128xf32> to vector<8x128xf32>
    %74 = arith.mulf %71, %73 : vector<8x128xf32>
    %cst_42 = arith.constant 0.00999999977 : f32
    %75 = vector.broadcast %cst_42 : f32 to vector<8x128xf32>
    %76 = arith.cmpf ogt, %1, %75 : vector<8x128xf32>
    %cst_43 = arith.constant 0xFF800000 : f32
    %77 = vector.broadcast %cst_43 : f32 to vector<8x128xf32>
    %78 = arith.select %76, %1, %77 : vector<8x128xi1>, vector<8x128xf32>
    %cst_44 = arith.constant dense<0xFF800000> : vector<8xf32>
    %79 = vector.multi_reduction <maximumf>, %78, %cst_44 [1] : vector<8x128xf32> to vector<8xf32>
    %80 = vector.shape_cast %79 : vector<8xf32> to vector<8x1xf32>
    %cst_45 = arith.constant 0.000000e+00 : f32
    %81 = vector.broadcast %cst_45 : f32 to vector<8x1xf32>
    %cst_46 = arith.constant 0xFF800000 : f32
    %cst_47 = arith.constant 0xFF800000 : f32
    %82:3 = scf.while (%arg5 = %78, %arg6 = %81, %arg7 = %80) : (vector<8x128xf32>, vector<8x1xf32>, vector<8x1xf32>) -> (vector<8x128xf32>, vector<8x1xf32>, vector<8x1xf32>) {
      %84 = vector.shape_cast %arg7 : vector<8x1xf32> to vector<1x8x1xf32>
      %cst_50 = arith.constant dense<0xFF800000> : vector<1xf32>
      %85 = vector.multi_reduction <maximumf>, %84, %cst_50 [1, 2] : vector<1x8x1xf32> to vector<1xf32>
      %86 = vector.shape_cast %85 : vector<1xf32> to vector<1x1x1xf32>
      %87 = vector.extract %86[0, 0, 0] : f32 from vector<1x1x1xf32>
      %88 = arith.cmpf ogt, %87, %cst_46 : f32
      scf.condition(%88) %arg5, %arg6, %arg7 : vector<8x128xf32>, vector<8x1xf32>, vector<8x1xf32>
    } do {
    ^bb0(%arg5: vector<8x128xf32>, %arg6: vector<8x1xf32>, %arg7: vector<8x1xf32>):
      %84 = vector.broadcast %cst_47 : f32 to vector<8x1xf32>
      %85 = arith.cmpf ogt, %arg7, %84 : vector<8x1xf32>
      %86 = vector.broadcast %arg7 : vector<8x1xf32> to vector<8x128xf32>
      %87 = arith.cmpf oeq, %arg5, %86 : vector<8x128xf32>
      %88 = vector.broadcast %85 : vector<8x1xi1> to vector<8x128xi1>
      %89 = arith.andi %87, %88 : vector<8x128xi1>
      %c128_i32 = arith.constant 128 : i32
      %90 = vector.broadcast %c128_i32 : i32 to vector<8x128xi32>
      %91 = arith.select %89, %37, %90 : vector<8x128xi1>, vector<8x128xi32>
      %cst_50 = arith.constant dense<2147483647> : vector<8xi32>
      %92 = vector.multi_reduction <minsi>, %91, %cst_50 [1] : vector<8x128xi32> to vector<8xi32>
      %93 = vector.shape_cast %92 : vector<8xi32> to vector<8x1xi32>
      %94 = vector.broadcast %93 : vector<8x1xi32> to vector<8x128xi32>
      %95 = arith.cmpi eq, %37, %94 : vector<8x128xi32>
      %cst_51 = arith.constant 0.000000e+00 : f32
      %96 = vector.broadcast %cst_51 : f32 to vector<8x128xf32>
      %97 = arith.select %95, %38, %96 : vector<8x128xi1>, vector<8x128xf32>
      %cst_52 = arith.constant dense<0.000000e+00> : vector<8xf32>
      %98 = vector.multi_reduction <add>, %97, %cst_52 [1] : vector<8x128xf32> to vector<8xf32>
      %99 = vector.shape_cast %98 : vector<8xf32> to vector<8x1xf32>
      %cst_53 = arith.constant 0.000000e+00 : f32
      %100 = vector.broadcast %cst_53 : f32 to vector<8x128xf32>
      %101 = arith.select %95, %25, %100 : vector<8x128xi1>, vector<8x128xf32>
      %cst_54 = arith.constant dense<0.000000e+00> : vector<8xf32>
      %102 = vector.multi_reduction <add>, %101, %cst_54 [1] : vector<8x128xf32> to vector<8xf32>
      %103 = vector.shape_cast %102 : vector<8xf32> to vector<8x1xf32>
      %cst_55 = arith.constant 0.000000e+00 : f32
      %104 = vector.broadcast %cst_55 : f32 to vector<8x128xf32>
      %105 = arith.select %95, %39, %104 : vector<8x128xi1>, vector<8x128xf32>
      %cst_56 = arith.constant dense<0.000000e+00> : vector<8xf32>
      %106 = vector.multi_reduction <add>, %105, %cst_56 [1] : vector<8x128xf32> to vector<8xf32>
      %107 = vector.shape_cast %106 : vector<8xf32> to vector<8x1xf32>
      %cst_57 = arith.constant 0.000000e+00 : f32
      %108 = vector.broadcast %cst_57 : f32 to vector<8x128xf32>
      %109 = arith.select %95, %29, %108 : vector<8x128xi1>, vector<8x128xf32>
      %cst_58 = arith.constant dense<0.000000e+00> : vector<8xf32>
      %110 = vector.multi_reduction <add>, %109, %cst_58 [1] : vector<8x128xf32> to vector<8xf32>
      %111 = vector.shape_cast %110 : vector<8xf32> to vector<8x1xf32>
      %112 = arith.subf %107, %99 : vector<8x1xf32>
      %113 = arith.subf %111, %103 : vector<8x1xf32>
      %114 = arith.mulf %112, %113 : vector<8x1xf32>
      %115 = vector.broadcast %99 : vector<8x1xf32> to vector<8x128xf32>
      %116 = arith.maximumf %38, %115 : vector<8x128xf32>
      %117 = vector.broadcast %103 : vector<8x1xf32> to vector<8x128xf32>
      %118 = arith.maximumf %25, %117 : vector<8x128xf32>
      %119 = vector.broadcast %107 : vector<8x1xf32> to vector<8x128xf32>
      %120 = arith.minimumf %39, %119 : vector<8x128xf32>
      %121 = vector.broadcast %111 : vector<8x1xf32> to vector<8x128xf32>
      %122 = arith.minimumf %29, %121 : vector<8x128xf32>
      %123 = arith.subf %120, %116 : vector<8x128xf32>
      %cst_59 = arith.constant 0.000000e+00 : f32
      %124 = vector.broadcast %cst_59 : f32 to vector<8x128xf32>
      %125 = arith.maximumf %123, %124 : vector<8x128xf32>
      %126 = arith.subf %122, %118 : vector<8x128xf32>
      %cst_60 = arith.constant 0.000000e+00 : f32
      %127 = vector.broadcast %cst_60 : f32 to vector<8x128xf32>
      %128 = arith.maximumf %126, %127 : vector<8x128xf32>
      %129 = arith.mulf %125, %128 : vector<8x128xf32>
      %130 = vector.broadcast %114 : vector<8x1xf32> to vector<8x128xf32>
      %131 = arith.addf %36, %130 : vector<8x128xf32>
      %132 = arith.subf %131, %129 : vector<8x128xf32>
      %cst_61 = arith.constant 9.99999971E-10 : f32
      %133 = vector.broadcast %cst_61 : f32 to vector<8x128xf32>
      %134 = arith.addf %132, %133 : vector<8x128xf32>
      %cst_62 = arith.constant 5.000000e-01 : f32
      %135 = vector.broadcast %cst_62 : f32 to vector<8x128xf32>
      %136 = arith.mulf %135, %134 : vector<8x128xf32>
      %137 = arith.cmpf ogt, %129, %136 : vector<8x128xf32>
      %cst_63 = arith.constant 0.000000e+00 : f32
      %138 = vector.broadcast %cst_63 : f32 to vector<8x128xf32>
      %139 = arith.select %95, %74, %138 : vector<8x128xi1>, vector<8x128xf32>
      %cst_64 = arith.constant dense<0.000000e+00> : vector<8xf32>
      %140 = vector.multi_reduction <add>, %139, %cst_64 [1] : vector<8x128xf32> to vector<8xf32>
      %141 = vector.shape_cast %140 : vector<8xf32> to vector<8x1xf32>
      %142 = arith.maximumf %arg6, %141 : vector<8x1xf32>
      %143 = arith.ori %137, %95 : vector<8x128xi1>
      %144 = vector.broadcast %cst_47 : f32 to vector<8x128xf32>
      %145 = arith.select %143, %144, %arg5 : vector<8x128xi1>, vector<8x128xf32>
      %cst_65 = arith.constant dense<0xFF800000> : vector<8xf32>
      %146 = vector.multi_reduction <maximumf>, %145, %cst_65 [1] : vector<8x128xf32> to vector<8xf32>
      %147 = vector.shape_cast %146 : vector<8xf32> to vector<8x1xf32>
      scf.yield %145, %142, %147 : vector<8x128xf32>, vector<8x1xf32>, vector<8x1xf32>
    }
    %c0_48 = arith.constant 0 : index
    %c0_49 = arith.constant 0 : index
    %83 = vector.load %arg3[%c0_48, %c0_49] : memref<8x1xf32, #tpu.memory_space<vmem>>, vector<8x1xf32>
    tpu.vector_store %arg3[%c0_48, %c0_49], %82#1 {strides = array<i32>} : memref<8x1xf32, #tpu.memory_space<vmem>>, vector<8x1xf32>,
    return
  }
  func.func @transform_0(%arg0: i32) -> i32 {
    %c0_i32 = arith.constant 0 : i32
    %c0_i32_0 = arith.constant 0 : i32
    return %c0_i32 : i32
  }
  func.func @transform_1(%arg0: i32) -> (i32, i32, i32) {
    %c0_i32 = arith.constant 0 : i32
    %c0_i32_0 = arith.constant 0 : i32
    %c0_i32_1 = arith.constant 0 : i32
    return %c0_i32, %arg0, %c0_i32_0 : i32, i32, i32
  }
  func.func @transform_2(%arg0: i32) -> (i32, i32) {
    %c0_i32 = arith.constant 0 : i32
    %c0_i32_0 = arith.constant 0 : i32
    return %arg0, %c0_i32 : i32, i32
  }
}

</mosaic_0001>

<llo_original>
// kernel: tpu_custom_call.1
$region0: #{tpu_custom_call.1}
  #allocation0 [shape = 'u32[]', space=smem, size = 0x4, offset = 0x4, fixed_abs, tag = 'smem constant byte address 0x4 - core index']
  #allocation1 [shape = 'u32[144,128]{1,0:T(1,128)}', space=vmem, size = 0x12000, scoped, tag = 'internal scratch']
  #allocation2 [shape = 'f32[8,128]{1,0:T(8,128)}', space=vmem, size = 0x1000, scoped, tag = 'scratch operand']
  %s0 = inlined_call_operand.hbm [shape: f32[4], index: 0, kind: input, shape index: {}]
  %s1 = inlined_call_operand.hbm [shape: f32[6,8,128], index: 1, kind: input, shape index: {}]
  %s2 = inlined_call_operand.vmem [shape: f32[8,1], index: 2, kind: output, shape index: {}]
  %s3 = sld [smem:[#allocation0]]
  $region33: #{tpu_custom_call.1} parent=0
    _
  %s5 = ssub.s32 1, %s3
  %s6 = scalar_select 0, %s5, %s3
  $region1: #{tpu_custom_call.1} parent=0
    #allocation3 [shape = 'u8[512]{0}', space=smem, size = 0x200, scoped, tag = 'input window, operand 0, single buffered']
    #allocation4 [shape = 's32[1]{0}', space=sflag, size = 0x4, scoped, tag = 'scoped memory for tpu_custom_call.1']
    #allocation5 [shape = 's32[1]{0}', space=sflag, size = 0x4, scoped, tag = 'scoped memory for tpu_custom_call.1']
    #allocation6 [shape = 'u8[24576]{0}', space=vmem, size = 0x6000, scoped, tag = 'input window, operand 1, single buffered']
    %7 = vsyncpa [#allocation5], 0
    %8 = vsyncpa [#allocation4], 0
    // Predicated region
    $region2: #{tpu_custom_call.1} parent=1 // pred_check
      _
    $region3: #{tpu_custom_call.1} parent=1 // pred_check_branch
      %10 = sbr.rel (0) target = $region5
    $region4: #{tpu_custom_call.1} parent=1 // pred_region
      %s12 = ssub.s32 16, 16
      %13 = vsyncadd [#allocation5], %s12
      %16 = dma.hbm_to_smem %s0, 16, [#allocation3], [#allocation5]
    $region5: #{tpu_custom_call.1} parent=1 // pred_fallthru
      _
    // Predicated region
    $region6: #{tpu_custom_call.1} parent=1 // pred_check
      _
    $region7: #{tpu_custom_call.1} parent=1 // pred_check_branch
      %18 = sbr.rel (0) target = $region9
    $region8: #{tpu_custom_call.1} parent=1 // pred_region
      %s20 = ssub.s32 768, 768
      %21 = vsyncadd [#allocation4], %s20
      %s22 = sshll.u32 [#allocation6], 4
      %s23 = int_to_ptr.vmem [resolvable:$true] %s22
      %28 = dma.hbm_to_vmem [thread:$0]  %s1, 768, %s23, [#allocation4], 128, 128, 8
    $region9: #{tpu_custom_call.1} parent=1 // pred_fallthru
      _
    // Predicated region
    $region10: #{tpu_custom_call.1} parent=1 // pred_check
      _
    $region11: #{tpu_custom_call.1} parent=1 // pred_check_branch
      %30 = sbr.rel (0) target = $region13
    $region12: #{tpu_custom_call.1} parent=1 // pred_region
      %31 = dma.done [#allocation5], 16
    $region13: #{tpu_custom_call.1} parent=1 // pred_fallthru
      _
    // Predicated region
    $region14: #{tpu_custom_call.1} parent=1 // pred_check
      _
    $region15: #{tpu_custom_call.1} parent=1 // pred_check_branch
      %33 = sbr.rel (0) target = $region17
    $region16: #{tpu_custom_call.1} parent=1 // pred_region
      %34 = dma.done [#allocation4], 768
    $region17: #{tpu_custom_call.1} parent=1 // pred_fallthru
      _
    %35 = sfence
    %s36 = scalar_lea.vmem [#allocation6], 32
    %v37 = vld [vmem:[%s36] sm:$0xff]
    %s38 = sld [smem:[#allocation3]]
    %s39 = sld [smem:[#allocation3 + $0x1]]
    %s40 = sld [smem:[#allocation3 + $0x2]]
    %s41 = sld [smem:[#allocation3 + $0x3]]
    %s42 = ssub.f32 %s40, %s38
    %s43 = ssub.f32 %s41, %s39
    %s44 = smul.f32 %s42, %s43
    %v45 = vld [vmem:[#allocation6] sm:$0xff]
    %v46 = vand.u32 2147483647, %v45
    %s47 = scalar_lea.vmem [#allocation6], 16
    %v48 = vld [vmem:[%s47] sm:$0xff]
    %v49 = vand.u32 2147483647, %v48
    %v50 = vmax.f32 %v46, %v49
    %51 = vmax.xlane.f32.xlu0 %v50
    %v52 = vpop.xlane.xlu0 %51
    %v53 = vrot.slane %v52, 4
    %v54 = vmax.f32 %v52, %v53
    %v55 = vrot.slane %v54, 2
    %v56 = vmax.f32 %v54, %v55
    %v57 = vrot.slane %v56, 1
    %v58 = vmax.f32 %v56, %v57
    %s59 = vtos %v58
    %s60 = smul.f32 %s59, 2.0
    %s61 = sadd.f32 %s60, 1.0
    %s62 = scalar_lea.vmem [#allocation6], 8
    %v63 = vld [vmem:[%s62] sm:$0xff]
    %s64 = scalar_lea.vmem [#allocation6], 24
    %v65 = vld [vmem:[%s64] sm:$0xff]
    %s66 = scalar_lea.vmem [#allocation6], 40
    %v67 = vld [vmem:[%s66] sm:$0xff]
    %v68 = vstv %s61
    %v69 = vmul.f32 %v67, %v68
    %v70 = vsub.f32 %v48, %v45
    %v71 = vsub.f32 %v65, %v63
    %v72 = vmul.f32 %v70, %v71
    %v73 = vlaneseq
    %v74 = vand.u32 %v73, 127
    %v75 = vadd.f32 %v45, %v69
    %v76 = vadd.f32 %v48, %v69
    %v77 = vstv %s38
    %v78 = vmax.f32 %v45, %v77
    %v79 = vstv %s39
    %v80 = vmax.f32 %v63, %v79
    %v81 = vstv %s40
    %v82 = vmin.f32 %v48, %v81
    %v83 = vstv %s41
    %v84 = vmin.f32 %v65, %v83
    %v85 = vsub.f32 %v82, %v78
    %v86 = vmax.f32 %v85, 0.0
    %v87 = vsub.f32 %v84, %v80
    %v88 = vmax.f32 %v87, 0.0
    %v89 = vmul.f32 %v86, %v88
    %v90 = vstv %s44
    %v91 = vadd.f32 %v72, %v90
    %v92 = vsub.f32 %v91, %v89
    %v93 = vadd.f32 %v92, 1e-09
    %v94 = vrcp.pop %v93
    %v95 = vmul.f32 %v89, %v94
    %v96 = vmul.f32 %v95, %v37
    %vm97 = vcmp.gt.f32.partialorder %v37, 0.01
    %v98 = vsel %vm97, %v37, -inf
    %99 = vmax.xlane.f32.xlu0 %v98
    %v100 = vpop.xlane.xlu0 %99
    // While loop
    $region18: #{tpu_custom_call.1} parent=1 // loop_pre_header
      _
    $region19: #{tpu_custom_call.1} parent=1 // loop_header
      %v102 = vphi %v98, %v171
      %v103 = vphi 0.0, %v169
      %v104 = vphi %v100, %v173
      %v105 = vrot.slane %v104, 4
      %v106 = vmax.f32 %v104, %v105
      %v107 = vrot.slane %v106, 2
      %v108 = vmax.f32 %v106, %v107
      %v109 = vrot.slane %v108, 1
      %v110 = vmax.f32 %v108, %v109
      %s111 = vtos %v110
      %p112 = scmp.gt.f32.partialorder %s111, -inf
      %p113 = pneg %p112
    $region20: #{tpu_custom_call.1} parent=1 // loop_header_branch
      %115 = sbr.rel (%p113) target = $region24
    $region21: #{tpu_custom_call.1} parent=1 // loop_body
      %vm116 = vcmp.gt.f32.partialorder %v104, -inf
      %vm117 = vcmp.eq.f32.partialorder %v102, %v104
      %v118 = vsel %vm116, 1, 0
      %vm119 = vcmp.eq.s32.totalorder %v118, 1
      %vm120 = vmand %vm117, %vm119
      %v121 = vsel %vm120, %v74, 128
      %v122 = vand.u32 %v121, 65535
      %v123 = vshra.s32 %v121, 16
      %v124 = vcvt.s32.f32 %v122
      %v125 = vcvt.s32.f32 %v123
      %126 = vmin.xlane.f32.xlu0 %v125
      %v127 = vpop.xlane.xlu0 %126
      %vm128 = vcmp.eq.f32.partialorder %v125, %v127
      %v129 = vsel %vm128, %v124, inf
      %130 = vmin.xlane.f32.xlu0 %v129
      %v131 = vpop.xlane.xlu0 %130
      %v132 = vcvt.f32.s32 %v131
      %v133 = vcvt.f32.s32 %v127
      %v134 = vshll.u32 %v133, 16
      %v135 = vadd.s32 %v134, %v132
      %vm136 = vcmp.eq.s32.totalorder %v74, %v135
      %v137 = vsel %vm136, %v75, 0.0
      %138 = vadd.xlane.f32.xlu0 %v137
      %v139 = vpop.xlane.xlu0 %138
      %v140 = vsel %vm136, %v63, 0.0
      %141 = vadd.xlane.f32.xlu0 %v140
      %v142 = vpop.xlane.xlu0 %141
      %v143 = vsel %vm136, %v76, 0.0
      %144 = vadd.xlane.f32.xlu0 %v143
      %v145 = vpop.xlane.xlu0 %144
      %v146 = vsel %vm136, %v65, 0.0
      %147 = vadd.xlane.f32.xlu0 %v146
      %v148 = vpop.xlane.xlu0 %147
      %v149 = vsub.f32 %v145, %v139
      %v150 = vsub.f32 %v148, %v142
      %v151 = vmul.f32 %v149, %v150
      %v152 = vmax.f32 %v75, %v139
      %v153 = vmax.f32 %v63, %v142
      %v154 = vmin.f32 %v76, %v145
      %v155 = vmin.f32 %v65, %v148
      %v156 = vsub.f32 %v154, %v152
      %v157 = vmax.f32 %v156, 0.0
      %v158 = vsub.f32 %v155, %v153
      %v159 = vmax.f32 %v158, 0.0
      %v160 = vmul.f32 %v157, %v159
      %v161 = vadd.f32 %v72, %v151
      %v162 = vsub.f32 %v161, %v160
      %v163 = vadd.f32 %v162, 1e-09
      %v164 = vmul.f32 %v163, 0.5
      %vm165 = vcmp.gt.f32.partialorder %v160, %v164
      %v166 = vsel %vm136, %v96, 0.0
      %167 = vadd.xlane.f32.xlu0 %v166
      %v168 = vpop.xlane.xlu0 %167
      %v169 = vmax.f32 %v103, %v168
      %vm170 = vmor %vm165, %vm136
      %v171 = vsel %vm170, -inf, %v102
      %172 = vmax.xlane.f32.xlu0 %v171
      %v173 = vpop.xlane.xlu0 %172
    $region22: #{tpu_custom_call.1} parent=1 // loop_footer
      _
    $region23: #{tpu_custom_call.1} parent=1 // loop_footer_branch
      %101 = sbr.rel target = $region19
    $region24: #{tpu_custom_call.1} parent=1 // loop_exit
      _
    %vm174 = vcmask 7168
    %175 = vst.msk [vmem:[%s2] sm:$0xff] %vm174, %v103
    // Predicated region
    $region25: #{tpu_custom_call.1} parent=1 // pred_check
      _
    $region26: #{tpu_custom_call.1} parent=1 // pred_check_branch
      %177 = sbr.rel (0) target = $region28
    $region27: #{tpu_custom_call.1} parent=1 // pred_region
      _
    $region28: #{tpu_custom_call.1} parent=1 // pred_fallthru
      _
    // Predicated region
    $region29: #{tpu_custom_call.1} parent=1 // pred_check
      _
    $region30: #{tpu_custom_call.1} parent=1 // pred_check_branch
      %179 = sbr.rel (0) target = $region32
    $region31: #{tpu_custom_call.1} parent=1 // pred_region
      _
    $region32: #{tpu_custom_call.1} parent=1 // pred_fallthru
      _
    %180 = vsyncpa [#allocation4], 1
    %181 = vsyncpa [#allocation5], 1

</llo_original>
